<compile_context>
chip_gen: v7x
topology: tpu7x:2x2x1
jax: 0.10.0
libtpu: 0.0.40
codegen_flags: <defaults>
</compile_context>

<pallas_src>
import math

import jax
import jax.numpy as jnp
import numpy as np
from jax.experimental import pallas as pl
from jax.experimental.pallas import tpu as pltpu


# --------------------------------------------------------------------------- #
# Kernel
# --------------------------------------------------------------------------- #
def _pe_add_kernel(x_ref, pos_ref, div_ref, phase_ref, o_ref):
    """out = x + sin(pos @ div + phase), computed in f32.

    Per-tile shapes:
      x_ref:     (tm, W)
      pos_ref:   (tm, Kp)   Kp == 1 (direct layout) or G = 128 // d_model
      div_ref:   (Kp, W)    grid-invariant (VMEM-resident)
      phase_ref: (1,  W)    grid-invariant (VMEM-resident)
    """
    pos = pos_ref[...]
    div = div_ref[...]
    if pos.shape[1] == 1:
        # Direct layout: (tm, 1) * (1, W) broadcast on the VPU.
        angle = pos * div
    else:
        # Lane-dense layout: (tm, G) @ (G, 128) -- the MXU performs the
        # "repeat each within-dialogue position over its d_model lanes"
        # expansion and the div_term scaling in one op on an idle unit.
        angle = jnp.dot(pos, div, preferred_element_type=jnp.float32)
    angle = angle + phase_ref[...]
    pe = jnp.sin(angle)  # single EUP transcendental per element (cos == sin(+pi/2))
    o_ref[...] = (x_ref[...].astype(jnp.float32) + pe).astype(o_ref.dtype)
    # TODO(synk): Dropout(p=0.1) is identity here (eval mode); training-mode
    # stochastic masking would need pltpu.prng_seed / pltpu.prng_random_bits.


# --------------------------------------------------------------------------- #
# Tiling / launch helpers
# --------------------------------------------------------------------------- #
def _round8_up(n):
    return max(8, ((n + 7) // 8) * 8)


def _choose_tile_rows(rows, width, itemsize, *, cap=16384,
                      bytes_budget=4 * 1024 * 1024, min_grid_steps=8,
                      min_block_bytes=512 * 1024):
    """Row-tile size for (rows, width) blocks.

    - One x/out block targets ~bytes_budget bytes (dtype-aware), so the fixed
      ~0.35 us per-grid-step overhead is small vs. the step's HBM time.
    - When the array is large enough, keep the grid >= min_grid_steps (with
      blocks still >= min_block_bytes) so v7x's two TensorCores get balanced
      work from dimension_semantics=("parallel",).
    """
    if rows <= 8:
        return rows  # full-extent block is legal regardless of the (8,128) rule
    row_bytes = width * itemsize
    budget_rows = max(8, (bytes_budget // row_bytes) // 8 * 8)
    tile = min(cap, budget_rows)
    balanced_rows = _round8_up(pl.cdiv(rows, min_grid_steps))
    min_rows = max(8, (min_block_bytes // row_bytes) // 8 * 8)
    if balanced_rows >= min_rows:
        tile = min(tile, balanced_rows)
    tile = max(8, tile)
    if tile >= rows:
        return rows
    return tile


def _pe_pallas_call(x_in, pos_in, div_in, phase_in, *, max_tile_rows,
                    block_bytes, donate_x):
    rows, W = x_in.shape
    kp = pos_in.shape[1]
    itemsize = jnp.dtype(x_in.dtype).itemsize

    tile_rows = _choose_tile_rows(rows, W, itemsize, cap=max_tile_rows,
                                  bytes_budget=block_bytes)
    grid = (pl.cdiv(rows, tile_rows),)

    # Double-buffered VMEM footprint: x-in + out (x dtype) + pos (f32),
    # plus the tiny grid-invariant div/phase tables.
    x_blk = tile_rows * W * itemsize
    pos_blk = tile_rows * kp * 4
    vmem_needed = 4 * x_blk + 2 * pos_blk + 2 * (kp + 1) * W * 4
    vmem_limit = int(min(max(vmem_needed * 5 // 4 + (2 << 20), 32 << 20),
                         48 << 20))  # <=48 MiB keeps headroom on v7x (64 MiB phys)

    cost = pl.CostEstimate(
        flops=int(2 * rows * W + 2 * rows * kp * W),
        transcendentals=int(rows * W),
        bytes_accessed=int(2 * rows * W * itemsize + rows * kp * 4
                           + (kp + 1) * W * 4),
    )

    return pl.pallas_call(
        _pe_add_kernel,
        out_shape=jax.ShapeDtypeStruct((rows, W), x_in.dtype),
        grid_spec=pltpu.PrefetchScalarGridSpec(
            num_scalar_prefetch=0,
            grid=grid,
            in_specs=[
                pl.BlockSpec((tile_rows, W), lambda i: (i, 0)),
                pl.BlockSpec((tile_rows, kp), lambda i: (i, 0)),
                pl.BlockSpec((kp, W), lambda i: (0, 0)),
                pl.BlockSpec((1, W), lambda i: (0, 0)),
            ],
            out_specs=pl.BlockSpec((tile_rows, W), lambda i: (i, 0)),
        ),
        compiler_params=pltpu.CompilerParams(
            dimension_semantics=("parallel",),
            vmem_limit_bytes=vmem_limit),
        cost_estimate=cost,
        input_output_aliases=({0: 0} if donate_x else {}),
    )(x_in, pos_in, div_in, phase_in)


# --------------------------------------------------------------------------- #
# Public wrapper
# --------------------------------------------------------------------------- #
def positional_encoding(x, dia_len, *, layout="auto", max_tile_rows=16384,
                        block_bytes=4 * 1024 * 1024, donate_x=False):
    """x: [total_len, d_model]; dia_len: list/array of dialogue lengths."""
    total_len, d_model = x.shape
    assert d_model % 2 == 0, "d_model must be even (as in the PyTorch module)"
    # Only check the length sum for concrete (non-traced) dia_len.
    if not isinstance(dia_len, jax.core.Tracer):
        try:
            s = int(np.asarray(dia_len).sum())
        except Exception:  # traced leaves inside a container, etc.
            s = None
        if s is not None and s != total_len:
            raise ValueError("sum(dia_len) must equal x.shape[0]")
    # TODO(synk): the PyTorch buffer stops at max_len=5000; PE here is analytic,
    # so dialogues longer than 5000 are extrapolated instead of raising.

    dia_len = jnp.asarray(dia_len, jnp.int32)
    # Within-dialogue position for every row (index bookkeeping, not hot path).
    starts = jnp.cumsum(dia_len) - dia_len
    seg_start = jnp.repeat(starts, dia_len, total_repeat_length=total_len)
    pos = (jnp.arange(total_len, dtype=jnp.int32) - seg_start).astype(jnp.float32)

    # Column-only terms, hoisted out of the kernel (computed once, tiny).
    col = jnp.arange(d_model, dtype=jnp.int32)
    div_term = jnp.exp((2 * (col // 2)).astype(jnp.float32)
                       * (-math.log(10000.0) / d_model))           # [d_model]
    phase_col = (col % 2).astype(jnp.float32) * (math.pi / 2.0)    # [d_model]

    lane_dense_ok = (d_model < 128) and (128 % d_model == 0)
    if layout == "lane_dense" and not lane_dense_ok:
        raise ValueError("lane-dense layout not applicable for this d_model")
    use_lane_dense = layout in ("auto", "lane_dense") and lane_dense_ok

    if use_lane_dense:
        G = 128 // d_model
        main_len = (total_len // G) * G
        if main_len == 0:
            use_lane_dense = False  # tiny input; direct path is fine

    if use_lane_dense:
        rows, W = main_len // G, 128
        x_main = x if main_len == total_len else x[:main_len]
        x_in = x_main.reshape(rows, W)                 # contiguous -> free view
        pos_in = pos[:main_len].reshape(rows, G)       # [rows, G]
        j = jnp.arange(W, dtype=jnp.int32)
        div_in = jnp.where(
            (j // d_model)[None, :] == jnp.arange(G, dtype=jnp.int32)[:, None],
            div_term[j % d_model][None, :], 0.0).astype(jnp.float32)  # [G, 128]
        phase_in = phase_col[j % d_model][None, :]                    # [1, 128]

        out_main = _pe_pallas_call(x_in, pos_in, div_in, phase_in,
                                   max_tile_rows=max_tile_rows,
                                   block_bytes=block_bytes,
                                   donate_x=donate_x)
        out_main = out_main.reshape(main_len, d_model)
        if main_len == total_len:
            return out_main
        # < G-row tail handled by a trivial XLA add; the concat is the only
        # extra copy and only triggers when total_len % G != 0 (never jnp.pad
        # the full array -- that would double HBM traffic on the hot path).
        tail_pe = jnp.sin(pos[main_len:, None] * div_term[None, :]
                          + phase_col[None, :])
        tail_out = (x[main_len:].astype(jnp.float32) + tail_pe).astype(x.dtype)
        return jnp.concatenate([out_main, tail_out], axis=0)

    # Direct [rows, d_model] layout (d_model >= 128, or d_model does not divide
    # 128, or the input is smaller than one 128-lane group).
    return _pe_pallas_call(x, pos[:, None], div_term[None, :],
                           phase_col[None, :],
                           max_tile_rows=max_tile_rows,
                           block_bytes=block_bytes,
                           donate_x=donate_x)


# --------------------------------------------------------------------------- #
# Pure-JAX reference mirroring the PyTorch forward (eval mode)
# --------------------------------------------------------------------------- #
def _reference(x, dia_len, max_len=5000):
    d_model = x.shape[1]
    position = jnp.arange(max_len, dtype=jnp.float32)[:, None]
    div_term = jnp.exp(jnp.arange(0, d_model, 2, dtype=jnp.float32)
                       * (-math.log(10000.0) / d_model))
    pe = jnp.zeros((max_len, d_model), jnp.float32)
    pe = pe.at[:, 0::2].set(jnp.sin(position * div_term))
    pe = pe.at[:, 1::2].set(jnp.cos(position * div_term))
    pos = np.concatenate([np.arange(L) for L in dia_len]).astype(np.int32)
    return (x.astype(jnp.float32) + pe[pos]).astype(x.dtype)


if __name__ == "__main__":
    key = jax.random.PRNGKey(0)

    # 1) Small lane-dense case: d_model=32 -> x viewed as [4, 128].
    d_model = 32
    dia_len = [5, 3, 8]                 # total_len = 16 (divisible by G=4)
    total_len = sum(dia_len)
    x = jax.random.normal(key, (total_len, d_model), dtype=jnp.float32)
    ref = _reference(x, dia_len)
    out = jax.block_until_ready(positional_encoding(x, dia_len))
    assert out.shape == (total_len, d_model)
    assert jnp.allclose(out, ref, atol=2e-5, rtol=1e-5), "lane-dense mismatch"

    # 2) total_len not divisible by G -> lane-dense main part + XLA tail add.
    dia_len2 = [5, 3, 9]                # total_len = 17
    total2 = sum(dia_len2)
    x2 = jax.random.normal(jax.random.fold_in(key, 1), (total2, d_model),
                           dtype=jnp.float32)
    out2 = jax.block_until_ready(positional_encoding(x2, dia_len2))
    assert out2.shape == (total2, d_model)
    assert jnp.allclose(out2, _reference(x2, dia_len2), atol=2e-5, rtol=1e-5), \
        "tail-path mismatch"

    # 3) Direct [rows, d_model] path (used when lane-dense preconditions fail).
    out3 = jax.block_until_ready(positional_encoding(x, dia_len, layout="direct"))
    assert jnp.allclose(out3, ref, atol=2e-5, rtol=1e-5), "direct-path mismatch"

    # 4) Larger case exercising multi-step grid / tile-size & grid-balance path:
    #    d_model=64 -> G=2, rows=16384, tile=2048 rows (1 MiB blocks), grid=8.
    d_model4, n_dia, dlen = 64, 128, 256
    dia_len4 = [dlen] * n_dia
    total4 = n_dia * dlen
    x4 = jax.random.normal(jax.random.fold_in(key, 2), (total4, d_model4),
                           dtype=jnp.float32)
    out4 = jax.block_until_ready(positional_encoding(x4, dia_len4))
    assert out4.shape == (total4, d_model4)
    assert jnp.allclose(out4, _reference(x4, dia_len4), atol=1e-3, rtol=1e-3), \
        "large-case mismatch"

    # 5) bf16 activations stay bf16 end-to-end (kernel upcasts internally).
    x5 = x.astype(jnp.bfloat16)
    out5 = jax.block_until_ready(positional_encoding(x5, dia_len))
    assert out5.dtype == jnp.bfloat16
    assert jnp.allclose(out5.astype(jnp.float32),
                        _reference(x5, dia_len).astype(jnp.float32),
                        atol=5e-2, rtol=5e-2), "bf16 mismatch"

    print("KERNEL_OK")
</pallas_src>

<mosaic_0001>
module attributes {stable_mosaic.version = 11 : i64} {
  func.func @_pe_add_kernel(%arg0: i32, %arg1: memref<4x128xf32, #tpu.memory_space<vmem>>, %arg2: memref<4x4xf32, #tpu.memory_space<vmem>>, %arg3: memref<4x128xf32, #tpu.memory_space<vmem>>, %arg4: memref<1x128xf32, #tpu.memory_space<vmem>>, %arg5: memref<4x128xf32, #tpu.memory_space<vmem>>) attributes {dimension_semantics = [#tpu.dimension_semantics<parallel>], iteration_bounds = array<i64: 1>, scalar_prefetch = 0 : i64, scratch_operands = 0 : i64, tpu.core_type = #tpu.core_type<tc>, window_params = [{transform_indices = @transform_0, window_bounds = array<i64: 4, 128>}, {transform_indices = @transform_1, window_bounds = array<i64: 4, 4>}, {pipeline_mode = #tpu.pipeline_mode<synchronous>, transform_indices = @transform_2, window_bounds = array<i64: 4, 128>}, {pipeline_mode = #tpu.pipeline_mode<synchronous>, transform_indices = @transform_3, window_bounds = array<i64: 1, 128>}, {transform_indices = @transform_4, window_bounds = array<i64: 4, 128>}]} {
    %c0 = arith.constant 0 : index
    %c0_0 = arith.constant 0 : index
    %0 = vector.load %arg2[%c0, %c0_0] : memref<4x4xf32, #tpu.memory_space<vmem>>, vector<4x4xf32>
    %c0_1 = arith.constant 0 : index
    %c0_2 = arith.constant 0 : index
    %1 = vector.load %arg3[%c0_1, %c0_2] : memref<4x128xf32, #tpu.memory_space<vmem>>, vector<4x128xf32>
    %cst = arith.constant dense<0.000000e+00> : vector<4x128xf32>
    %2 = tpu.matmul %0, %1, %cst {dimension_numbers = #tpu.dot_dimension_numbers<[1], [0], [0], [1], [0, 0, 1, 1], [], []>} : vector<4x4xf32>, vector<4x128xf32>, vector<4x128xf32> -> vector<4x128xf32>
    %c0_3 = arith.constant 0 : index
    %c0_4 = arith.constant 0 : index
    %3 = vector.load %arg4[%c0_3, %c0_4] : memref<1x128xf32, #tpu.memory_space<vmem>>, vector<1x128xf32>
    %4 = vector.broadcast %3 : vector<1x128xf32> to vector<4x128xf32>
    %5 = arith.addf %2, %4 : vector<4x128xf32>
    %6 = math.sin %5 : vector<4x128xf32>
    %c0_5 = arith.constant 0 : index
    %c0_6 = arith.constant 0 : index
    %7 = vector.load %arg1[%c0_5, %c0_6] : memref<4x128xf32, #tpu.memory_space<vmem>>, vector<4x128xf32>
    %8 = arith.addf %7, %6 : vector<4x128xf32>
    %c0_7 = arith.constant 0 : index
    %c0_8 = arith.constant 0 : index
    %9 = vector.load %arg5[%c0_7, %c0_8] : memref<4x128xf32, #tpu.memory_space<vmem>>, vector<4x128xf32>
    tpu.vector_store %arg5[%c0_7, %c0_8], %8 {strides = array<i32>} : memref<4x128xf32, #tpu.memory_space<vmem>>, vector<4x128xf32>,
    return
  }
  func.func @transform_0(%arg0: i32) -> (i32, i32) {
    %c0_i32 = arith.constant 0 : i32
    %c0_i32_0 = arith.constant 0 : i32
    return %arg0, %c0_i32 : i32, i32
  }
  func.func @transform_1(%arg0: i32) -> (i32, i32) {
    %c0_i32 = arith.constant 0 : i32
    %c0_i32_0 = arith.constant 0 : i32
    return %arg0, %c0_i32 : i32, i32
  }
  func.func @transform_2(%arg0: i32) -> (i32, i32) {
    %c0_i32 = arith.constant 0 : i32
    %c0_i32_0 = arith.constant 0 : i32
    %c0_i32_1 = arith.constant 0 : i32
    return %c0_i32, %c0_i32_0 : i32, i32
  }
  func.func @transform_3(%arg0: i32) -> (i32, i32) {
    %c0_i32 = arith.constant 0 : i32
    %c0_i32_0 = arith.constant 0 : i32
    %c0_i32_1 = arith.constant 0 : i32
    return %c0_i32, %c0_i32_0 : i32, i32
  }
  func.func @transform_4(%arg0: i32) -> (i32, i32) {
    %c0_i32 = arith.constant 0 : i32
    %c0_i32_0 = arith.constant 0 : i32
    return %arg0, %c0_i32 : i32, i32
  }
}

</mosaic_0001>

<llo_original>
// kernel: tpu_custom_call.1
$region0: #{tpu_custom_call.1}
  #allocation0 [shape = 'u32[]', space=smem, size = 0x4, offset = 0x4, fixed_abs, tag = 'smem constant byte address 0x4 - core index']
  #allocation1 [shape = 'u32[144,128]{1,0:T(1,128)}', space=vmem, size = 0x12000, scoped, tag = 'internal scratch']
  %s0 = inlined_call_operand.hbm [shape: f32[4,128], index: 0, kind: input, shape index: {}]
  %s1 = inlined_call_operand.hbm [shape: f32[4,4], index: 1, kind: input, shape index: {}]
  %s2 = inlined_call_operand.vmem [shape: f32[4,128], index: 2, kind: input, shape index: {}]
  %s3 = inlined_call_operand.vmem [shape: f32[1,128], index: 3, kind: input, shape index: {}]
  %s4 = inlined_call_operand.hbm [shape: f32[4,128], index: 4, kind: output, shape index: {}]
  %s5 = sld [smem:[#allocation0]]
  $region34: #{tpu_custom_call.1} parent=0
    _
  %s7 = ssub.s32 1, %s5
  %s8 = scalar_select 0, %s7, %s5
  $region1: #{tpu_custom_call.1} parent=0
    #allocation2 [shape = 'u8[2048]{0}', space=vmem, size = 0x800, scoped, tag = 'input window, operand 0, single buffered']
    #allocation3 [shape = 's32[1]{0}', space=sflag, size = 0x4, scoped, tag = 'scoped memory for tpu_custom_call.1']
    #allocation4 [shape = 's32[1]{0}', space=sflag, size = 0x4, scoped, tag = 'scoped memory for tpu_custom_call.1']
    #allocation5 [shape = 'u8[2048]{0}', space=vmem, size = 0x800, scoped, tag = 'input window, operand 1, single buffered']
    #allocation6 [shape = 's32[1]{0}', space=sflag, size = 0x4, scoped, tag = 'scoped memory for tpu_custom_call.1']
    #allocation7 [shape = 'u8[2048]{0}', space=vmem, size = 0x800, scoped, tag = 'output window, operand 0, single buffered']
    %9 = vsyncpa [#allocation3], 0
    %10 = vsyncpa [#allocation6], 0
    %11 = vsyncpa [#allocation4], 0
    // Predicated region
    $region2: #{tpu_custom_call.1} parent=1 // pred_check
      _
    $region3: #{tpu_custom_call.1} parent=1 // pred_check_branch
      %13 = sbr.rel (0) target = $region5
    $region4: #{tpu_custom_call.1} parent=1 // pred_region
      %s15 = ssub.s32 64, 64
      %16 = vsyncadd [#allocation3], %s15
      %s18 = sshll.u32 [#allocation2], 4
      %s19 = int_to_ptr.vmem [resolvable:$true] %s18
      %21 = dma.hbm_to_vmem [thread:$0]  %s0, 64, %s19, [#allocation3]
    $region5: #{tpu_custom_call.1} parent=1 // pred_fallthru
      _
    // Predicated region
    $region6: #{tpu_custom_call.1} parent=1 // pred_check
      _
    $region7: #{tpu_custom_call.1} parent=1 // pred_check_branch
      %23 = sbr.rel (0) target = $region9
    $region8: #{tpu_custom_call.1} parent=1 // pred_region
      %s25 = ssub.s32 64, 64
      %26 = vsyncadd [#allocation6], %s25
      %s28 = sshll.u32 [#allocation5], 4
      %s29 = int_to_ptr.vmem [resolvable:$true] %s28
      %31 = dma.hbm_to_vmem [thread:$0]  %s1, 64, %s29, [#allocation6]
    $region9: #{tpu_custom_call.1} parent=1 // pred_fallthru
      _
    // Predicated region
    $region10: #{tpu_custom_call.1} parent=1 // pred_check
      _
    $region11: #{tpu_custom_call.1} parent=1 // pred_check_branch
      %33 = sbr.rel (0) target = $region13
    $region12: #{tpu_custom_call.1} parent=1 // pred_region
      _
    $region13: #{tpu_custom_call.1} parent=1 // pred_fallthru
      _
    // Predicated region
    $region14: #{tpu_custom_call.1} parent=1 // pred_check
      _
    $region15: #{tpu_custom_call.1} parent=1 // pred_check_branch
      %35 = sbr.rel (0) target = $region17
    $region16: #{tpu_custom_call.1} parent=1 // pred_region
      _
    $region17: #{tpu_custom_call.1} parent=1 // pred_fallthru
      _
    // Predicated region
    $region18: #{tpu_custom_call.1} parent=1 // pred_check
      _
    $region19: #{tpu_custom_call.1} parent=1 // pred_check_branch
      %37 = sbr.rel (0) target = $region21
    $region20: #{tpu_custom_call.1} parent=1 // pred_region
      %38 = dma.done [#allocation3], 64
    $region21: #{tpu_custom_call.1} parent=1 // pred_fallthru
      _
    // Predicated region
    $region22: #{tpu_custom_call.1} parent=1 // pred_check
      _
    $region23: #{tpu_custom_call.1} parent=1 // pred_check_branch
      %40 = sbr.rel (0) target = $region25
    $region24: #{tpu_custom_call.1} parent=1 // pred_region
      %41 = dma.done [#allocation6], 64
    $region25: #{tpu_custom_call.1} parent=1 // pred_fallthru
      _
    %v42 = vld [vmem:[#allocation5] sm:$0xf]
    %v43 = vld [vmem:[%s2] sm:$0xf]
    %v44 = vld [vmem:[%s3] sm:$0x1]
    %v46 = vlaneseq
    %v47 = vshrl.u32 %v46, 7
    %v48 = vsub.s32 0, %v47
    %v49 = vrot.slane %v44, %v48
    %vm51 = vcmask 31744
    %v53 = vsel %vm51, %v42, 0
    %vm55 = vcmask 1043456
    %v57 = vsel %vm55, %v43, 0
    %59 = vmatprep.subr.mxu0 0.0
    %60 = vmatpush1.msra.mxu0 %v57
    %61 = vmatprep.subr.mxu0 0.0
    %62 = vmatpush1.msra.mxu0 0.0
    %63 = vmatprep.subr.mxu0 0.0
    %64 = vmatpush1.msra.mxu0 0.0
    %65 = vmatprep.subr.mxu0 0.0
    %66 = vmatpush1.msra.mxu0 0.0
    %67 = vmatprep.subr.mxu0 0.0
    %68 = vmatpush1.msra.mxu0 0.0
    %69 = vmatprep.subr.mxu0 0.0
    %70 = vmatpush1.msra.mxu0 0.0
    %71 = vmatprep.subr.mxu0 0.0
    %72 = vmatpush1.msra.mxu0 0.0
    %73 = vmatprep.subr.mxu0 0.0
    %74 = vmatpush1.msra.mxu0 0.0
    %75 = vmatprep.subr.mxu0 0.0
    %76 = vmatpush1.msra.mxu0 0.0
    %77 = vmatprep.subr.mxu0 0.0
    %78 = vmatpush1.msra.mxu0 0.0
    %79 = vmatprep.subr.mxu0 0.0
    %80 = vmatpush1.msra.mxu0 0.0
    %81 = vmatprep.subr.mxu0 0.0
    %82 = vmatpush1.msra.mxu0 0.0
    %83 = vmatprep.subr.mxu0 0.0
    %84 = vmatpush1.msra.mxu0 0.0
    %85 = vmatprep.subr.mxu0 0.0
    %86 = vmatpush1.msra.mxu0 0.0
    %87 = vmatprep.subr.mxu0 0.0
    %88 = vmatpush1.msra.mxu0 0.0
    %89 = vmatprep.subr.mxu0 0.0
    %90 = vmatpush1.msra.mxu0 0.0
    %91 = vmatprep.subr.mxu0 0.0
    %92 = vmatpush1.msra.mxu0 0.0
    %93 = vmatprep.subr.mxu0 0.0
    %94 = vmatpush1.msra.mxu0 0.0
    %95 = vmatprep.subr.mxu0 0.0
    %96 = vmatpush1.msra.mxu0 0.0
    %97 = vmatprep.subr.mxu0 0.0
    %98 = vmatpush1.msra.mxu0 0.0
    %99 = vmatprep.subr.mxu0 0.0
    %100 = vmatpush1.msra.mxu0 0.0
    %101 = vmatprep.subr.mxu0 0.0
    %102 = vmatpush1.msra.mxu0 0.0
    %103 = vmatprep.subr.mxu0 0.0
    %104 = vmatpush1.msra.mxu0 0.0
    %105 = vmatprep.subr.mxu0 0.0
    %106 = vmatpush1.msra.mxu0 0.0
    %107 = vmatprep.subr.mxu0 0.0
    %108 = vmatpush1.msra.mxu0 0.0
    %109 = vmatprep.subr.mxu0 0.0
    %110 = vmatpush1.msra.mxu0 0.0
    %111 = vmatprep.subr.mxu0 0.0
    %112 = vmatpush1.msra.mxu0 0.0
    %113 = vmatprep.subr.mxu0 0.0
    %114 = vmatpush1.msra.mxu0 0.0
    %115 = vmatprep.subr.mxu0 0.0
    %116 = vmatpush1.msra.mxu0 0.0
    %117 = vmatprep.subr.mxu0 0.0
    %118 = vmatpush1.msra.mxu0 0.0
    %119 = vmatprep.subr.mxu0 0.0
    %120 = vmatpush1.msra.mxu0 0.0
    %121 = vmatprep.subr.mxu0 0.0
    %122 = vmatpush1.msra.mxu0 0.0
    %123 = vmatprep.mubr.f32.mxu0 0.0
    %124 = vmatmul.mubr.f32.gmra.mrb[0].mxu0 %v53
    %v125 = vpop.f32.mrb[0].mxu0
    %v126 = vadd.f32 %v49, %v125
    %v127 = vpop.f32.mrb[0].mxu0
    %128 = vdwg.mxu0
    %v129 = vand.u32 2147483647, %v126
    %vm130 = vcmp.le.f32.partialorder %v129, 0.7853982
    %vm131 = vcmp.lt.s32.totalorder %v126, 0
    %v132 = vand.u32 %v126, 2139095040
    %v133 = vshrl.u32 %v132, 23
    %v134 = vsub.s32 %v133, 127
    %v135 = vand.u32 2147483647, %v126
    %v136 = vand.u32 %v135, 8388607
    %v137 = vor.u32 %v136, 8388608
    %v138 = vsub.s32 0, %v137
    %v139 = vadd.s32 %v134, 1
    %vm140 = vcmp.gt.s32.totalorder %v139, 0
    %v141 = vsel %vm140, %v139, 0
    %v142 = vshrl.u32 %v141, 5
    %v143 = vand.u32 %v141, 31
    %v144 = vsub.s32 32, %v143
    %v145 = vshrl.u32 683565275, %v144
    %v146 = vshll.u32 683565275, %v143
    %v147 = vshrl.u32 2475754826, %v144
    %v148 = vor.u32 %v146, %v147
    %v149 = vshll.u32 2475754826, %v143
    %v150 = vshrl.u32 2131351028, %v144
    %v151 = vor.u32 %v149, %v150
    %v152 = vshll.u32 2131351028, %v143
    %v153 = vshrl.u32 2102212464, %v144
    %v154 = vor.u32 %v152, %v153
    %v155 = vshll.u32 2102212464, %v143
    %v156 = vshrl.u32 920167782, %v144
    %v157 = vor.u32 %v155, %v156
    %v158 = vshll.u32 920167782, %v143
    %v159 = vshrl.u32 1326507024, %v144
    %v160 = vor.u32 %v158, %v159
    %vm161 = vcmp.lt.s32.totalorder %v142, 1
    %vm162 = vcmp.lt.s32.totalorder %v142, 2
    %vm163 = vcmp.lt.s32.totalorder %v142, 3
    %vm164 = vcmp.lt.s32.totalorder %v142, 4
    %v165 = vsel %vm161, %v145, %v148
    %v166 = vsel %vm164, %v154, 2102212464
    %v167 = vsel %vm163, %v151, %v166
    %v168 = vsel %vm162, %v165, %v167
    %v169 = vsel %vm161, %v148, %v151
    %v170 = vsel %vm164, %v157, 920167782
    %v171 = vsel %vm163, %v154, %v170
    %v172 = vsel %vm162, %v169, %v171
    %v173 = vsel %vm161, %v151, %v154
    %v174 = vsel %vm164, %v160, 1326507024
    %v175 = vsel %vm163, %v157, %v174
    %v176 = vsel %vm162, %v173, %v175
    %v177 = vshll.u32 %v137, 8
    %v178 = vmul.u32.u64.compose %v177, %v176
    %v179 = vextract.low.u32 %v178
    %v180 = vextract.high.u32 %v178
    %v181 = vmul.u32.u64.compose %v177, %v172
    %v182 = vextract.low.u32 %v181
    %v183 = vextract.high.u32 %v181
    %v184 = vmul.u32 %v177, %v168
    %v185 = vadd.s32 %v180, %v182
    %vm186 = vc.u32 %v180, %v182
    %v187 = vadd.s32 %v183, 1
    %v188 = vsel %vm186, %v187, %v183
    %v189 = vadd.s32 %v184, %v188
    %v190 = vadd.s32 %v189, 536870912
    %v191 = vshrl.u32 %v190, 30
    %v192 = vshll.u32 %v191, 30
    %v193 = vsub.s32 %v189, %v192
    %vm194 = vcmp.lt.s32.totalorder %v193, 0
    %v195 = vsub.s32 0, %v193
    %v196 = vsel %vm194, %v195, %v193
    %v197 = vclz %v196
    %v198 = vsub.s32 %v197, 2
    %vm199 = vcmp.gt.s32.totalorder 0, %v198
    %v200 = vsel %vm199, 0, %v198
    %v201 = vsub.s32 32, %v200
    %v202 = vshll.u32 %v193, %v200
    %v203 = vshrl.u32 %v185, %v201
    %v204 = vor.u32 %v202, %v203
    %v205 = vsub.s32 4294967266, %v200
    %v206 = vadd.s32 %v205, 127
    %v207 = vshll.u32 %v206, 23
    %v208 = vor.u32 4788187, %v207
    %v209 = vand.u32 2147483647, %v208
    %v211 = vcvt.s32.f32 %v204
    %v212 = vmul.f32 %v211, %v209
    %v213 = vxor.u32 %v212, 2147483648
    %v214 = vsel %vm131, %v213, %v212
    %v215 = vsub.s32 4, %v191
    %v216 = vsel %vm131, %v215, %v191
    %v217 = vsel %vm130, %v126, %v214
    %v218 = vsel %vm130, 0, %v216
    %v219 = vcosq.f32.pop %v217
    %v220 = vsinq.f32.pop %v217
    %vm221 = vweird.f32 %v126
    %v222 = vadd.s32 %v218, 3
    %v223 = vand.u32 %v222, 3
    %vm224 = vcmp.lt.s32.totalorder %v223, 2
    %vm225 = vcmp.eq.s32.totalorder %v223, 0
    %v226 = vxor.u32 %v220, 2147483648
    %v227 = vsel %vm225, %v219, %v226
    %vm228 = vcmp.eq.s32.totalorder %v223, 2
    %v229 = vxor.u32 %v219, 2147483648
    %v230 = vsel %vm228, %v229, %v220
    %v231 = vsel %vm224, %v227, %v230
    %v232 = vsel %vm221, nan, %v231
    %v233 = vld [vmem:[#allocation2] sm:$0xf]
    %v234 = vadd.f32 %v233, %v232
    %235 = vst [vmem:[#allocation7] sm:$0xf] %v234
    // Predicated region
    $region26: #{tpu_custom_call.1} parent=1 // pred_check
      _
    $region27: #{tpu_custom_call.1} parent=1 // pred_check_branch
      %237 = sbr.rel (0) target = $region29
    $region28: #{tpu_custom_call.1} parent=1 // pred_region
      %s239 = ssub.s32 64, 64
      %240 = vsyncadd [#allocation4], %s239
      %s242 = sshll.u32 [#allocation7], 4
      %s243 = int_to_ptr.vmem [resolvable:$true] %s242
      %245 = dma.vmem_to_hbm [thread:$0]  %s243, 64, %s4, [#allocation4]
    $region29: #{tpu_custom_call.1} parent=1 // pred_fallthru
      _
    // Predicated region
    $region30: #{tpu_custom_call.1} parent=1 // pred_check
      _
    $region31: #{tpu_custom_call.1} parent=1 // pred_check_branch
      %247 = sbr.rel (0) target = $region33
    $region32: #{tpu_custom_call.1} parent=1 // pred_region
      %248 = dma.done [#allocation4], 64
    $region33: #{tpu_custom_call.1} parent=1 // pred_fallthru
      _
    %249 = vsyncpa [#allocation3], 1
    %250 = vsyncpa [#allocation6], 1
    %251 = vsyncpa [#allocation4], 1

</llo_original>
